<compile_context>
chip_gen: v7x
topology: tpu7x:2x2x1
jax: 0.10.0
libtpu: 0.0.40
codegen_flags: <defaults>
</compile_context>

<pallas_src>
import functools

import jax
import jax.numpy as jnp
from jax.experimental import pallas as pl
from jax.experimental.pallas import tpu as pltpu


def _round_up(n, m):
    return ((n + m - 1) // m) * m


def _num_tensorcores():
    """2 on v7x (two TensorCores per chip), 1 on v5e/v6e."""
    try:
        kind = jax.devices()[0].device_kind.lower()
    except Exception:
        return 1
    return 2 if "v7" in kind else 1


def _vmem_capacity_bytes():
    try:
        return int(pltpu.get_tpu_info().vmem_capacity_bytes)
    except Exception:
        return 64 * 1024 * 1024          # conservative: v7x per-TC VMEM


def _supports_single_buffering():
    # One-time, module-level capability check (spec construction only — no
    # kernel compilation, no hot-path retry).
    if not hasattr(pl, "Buffered"):
        return False
    try:
        pl.BlockSpec((8, 128), lambda i: (0, 0), pipeline_mode=pl.Buffered(1))
        return True
    except TypeError:
        return False


_SINGLE_BUFFER_WEIGHTS = _supports_single_buffering()


def autoencoder_kernel(x_ref, wt_ref, w_ref, b1_ref, b2_ref, o_ref):
    mm_dtype = wt_ref.dtype                               # f32 (default) or bf16
    x = x_ref[...]                                        # (tm, d_in)

    # encode: relu(x @ W.T + b1). W^T pre-transposed in wrapper -> natural
    # contraction, no per-step XLU transpose.
    h = jnp.dot(x.astype(mm_dtype), wt_ref[...],
                preferred_element_type=jnp.float32)       # (tm, d_out), f32 acc
    h = jnp.maximum(h + b1_ref[...], 0.0)                 # f32 bias + ReLU (VPU)

    # decode: tanh(h @ W + b2). W is already (K=d_out, N=d_in).
    y = jnp.dot(h.astype(mm_dtype), w_ref[...],
                preferred_element_type=jnp.float32) + b2_ref[...]
    o_ref[...] = jnp.tanh(y).astype(o_ref.dtype)          # tanh on EUP


@functools.lru_cache(maxsize=None)
def _build_call(B_pad, d_in, d_out, tm, out_dtype_name, mm_dtype_name):
    out_dtype = jnp.dtype(out_dtype_name)
    mm_dtype = jnp.dtype(mm_dtype_name)
    wbytes = mm_dtype.itemsize
    obytes = out_dtype.itemsize
    n_wbuf = 1 if _SINGLE_BUFFER_WEIGHTS else 2

    # VMEM budget: double-buffered x/out tiles, n_wbuf-buffered weight copies,
    # biases, plus headroom for f32 in-kernel intermediates (h, y).
    est = (2 * tm * d_in * (4 + obytes)                   # x + out tiles (2 bufs)
           + n_wbuf * 2 * d_in * d_out * wbytes           # W and W^T
           + n_wbuf * (d_in + d_out) * 4                  # biases
           + 4 * tm * max(d_in, d_out) * 4)               # f32 intermediates
    vmem_limit = int(min(max(2 * est, 4 * 1024 * 1024),
                         0.7 * _vmem_capacity_bytes()))

    def const_spec(shape):
        # Grid-invariant operand: single HBM read, single VMEM buffer.
        if _SINGLE_BUFFER_WEIGHTS:
            return pl.BlockSpec(shape, lambda i: (0, 0),
                                pipeline_mode=pl.Buffered(1))
        return pl.BlockSpec(shape, lambda i: (0, 0))

    cost = pl.CostEstimate(
        flops=4 * B_pad * d_in * d_out,                   # two matmuls
        transcendentals=B_pad * d_in,                     # tanh
        bytes_accessed=(B_pad * d_in * (4 + obytes)       # x + out
                        + 2 * d_out * d_in * wbytes       # W + W^T
                        + (d_in + d_out) * 4),
    )

    return pl.pallas_call(
        autoencoder_kernel,
        out_shape=jax.ShapeDtypeStruct((B_pad, d_in), out_dtype),
        grid_spec=pltpu.PrefetchScalarGridSpec(
            num_scalar_prefetch=0,
            grid=(B_pad // tm,),
            in_specs=[
                pl.BlockSpec((tm, d_in), lambda i: (i, 0)),   # x tile (pipelined)
                const_spec((d_in, d_out)),                    # W^T (encode)
                const_spec((d_out, d_in)),                    # W   (decode)
                const_spec((1, d_out)),                       # b1
                const_spec((1, d_in)),                        # b2
            ],
            out_specs=pl.BlockSpec((tm, d_in), lambda i: (i, 0)),
        ),
        compiler_params=pltpu.CompilerParams(
            dimension_semantics=("parallel",),
            vmem_limit_bytes=vmem_limit,
        ),
        cost_estimate=cost,
    )


def _pick_tm(B, num_tc, cap=512):
    B8 = _round_up(B, 8)
    if num_tc <= 1:
        # Single TensorCore (v5e/v6e): one big tile; grid collapses to 1 for
        # small B, amortizing the ~0.35 us per-grid-step overhead.
        return min(B8, cap)
    # v7x: keep grid >= num_tc so both TensorCores get work.
    per_core = _round_up(pl.cdiv(B8, num_tc), 8)
    return min(per_core, cap)


@functools.partial(jax.jit, static_argnames=("tm", "mm_dtype_name"))
def _forward_jit(x, w, b1, b2, *, tm, mm_dtype_name):
    B, d_in = x.shape
    d_out = w.shape[0]
    mm_dtype = jnp.dtype(mm_dtype_name)

    B_pad = _round_up(B, tm)
    x_p = x if B_pad == B else jnp.pad(x, ((0, B_pad - B), (0, 0)))

    # Weight transpose / cast + bias reshape fused into the same jit (single
    # dispatch; no standalone per-call XLA ops with their own HBM round trips).
    w_c = w.astype(mm_dtype)
    wt_c = w.T.astype(mm_dtype)
    b1_2d = b1.reshape(1, d_out).astype(jnp.float32)
    b2_2d = b2.reshape(1, d_in).astype(jnp.float32)

    call = _build_call(B_pad, d_in, d_out, tm,
                       jnp.dtype(x.dtype).name, mm_dtype_name)
    out = call(x_p, wt_c, w_c, b1_2d, b2_2d)
    return out[:B] if B_pad != B else out


def autoencoder_forward(x, w, b1, b2, *, matmul_dtype=jnp.float32, tm=None):
    """x: (B, d_in), w: (d_out, d_in), b1: (d_out,), b2: (d_in,).

    Default matmul_dtype=float32 matches PyTorch nn.Linear semantics; pass
    matmul_dtype=jnp.bfloat16 to opt into bf16 MXU inputs (f32 accumulation,
    f32 bias/ReLU/tanh).
    """
    B = x.shape[0]
    if tm is None:
        tm = _pick_tm(B, _num_tensorcores())
    tm = _round_up(max(8, min(int(tm), _round_up(B, 8))), 8)
    return _forward_jit(x, w, b1, b2, tm=tm,
                        mm_dtype_name=jnp.dtype(matmul_dtype).name)


def reference_forward(x, w, b1, b2, matmul_dtype=jnp.float32):
    xd = x.astype(matmul_dtype)
    wd = w.astype(matmul_dtype)
    h = jnp.maximum(
        jnp.dot(xd, wd.T, preferred_element_type=jnp.float32) + b1, 0.0)
    y = jnp.dot(h.astype(matmul_dtype), wd,
                preferred_element_type=jnp.float32) + b2
    return jnp.tanh(y)


if __name__ == "__main__":
    # Small, MXU-friendly shapes: Linear(d_in=256 -> d_out=128), batch 256.
    B, d_in, d_out = 256, 256, 128

    key = jax.random.PRNGKey(0)
    kx, kw, kb1, kb2 = jax.random.split(key, 4)

    x = jax.random.normal(kx, (B, d_in), dtype=jnp.float32)
    bound = 1.0 / (d_in ** 0.5)
    w = jax.random.uniform(kw, (d_out, d_in), minval=-bound, maxval=bound,
                           dtype=jnp.float32)
    b1 = jax.random.uniform(kb1, (d_out,), minval=-bound, maxval=bound,
                            dtype=jnp.float32)
    b2 = jax.random.uniform(kb2, (d_in,), minval=0.0, maxval=1.0,
                            dtype=jnp.float32)   # nn.Parameter(rand(d_in))

    # Default path: exact f32 matmul semantics (PyTorch parity).
    out = jax.block_until_ready(autoencoder_forward(x, w, b1, b2))
    ref = reference_forward(x, w, b1, b2)
    assert out.shape == (B, d_in)
    assert jnp.allclose(out, ref, atol=1e-5, rtol=1e-5)

    # Opt-in perf path: bf16 MXU inputs, f32 accumulate + f32 elementwise.
    out_bf16 = jax.block_until_ready(
        autoencoder_forward(x, w, b1, b2, matmul_dtype=jnp.bfloat16))
    ref_bf16 = reference_forward(x, w, b1, b2, matmul_dtype=jnp.bfloat16)
    assert out_bf16.shape == (B, d_in)
    assert jnp.allclose(out_bf16, ref_bf16, atol=1e-2, rtol=1e-2)
    assert jnp.allclose(out_bf16, ref, atol=5e-2, rtol=5e-2)

    print("KERNEL_OK")
</pallas_src>

<mosaic_0001>
module attributes {stable_mosaic.version = 11 : i64} {
  func.func @autoencoder_kernel(%arg0: i32, %arg1: memref<256x256xf32, #tpu.memory_space<vmem>>, %arg2: memref<256x128xf32, #tpu.memory_space<vmem>>, %arg3: memref<128x256xf32, #tpu.memory_space<vmem>>, %arg4: memref<1x128xf32, #tpu.memory_space<vmem>>, %arg5: memref<1x256xf32, #tpu.memory_space<vmem>>, %arg6: memref<256x256xf32, #tpu.memory_space<vmem>>) attributes {dimension_semantics = [#tpu.dimension_semantics<parallel>], iteration_bounds = array<i64: 1>, scalar_prefetch = 0 : i64, scratch_operands = 0 : i64, tpu.core_type = #tpu.core_type<tc>, window_params = [{transform_indices = @transform_0, window_bounds = array<i64: 256, 256>}, {pipeline_mode = #tpu.pipeline_mode<synchronous>, transform_indices = @transform_1, window_bounds = array<i64: 256, 128>}, {pipeline_mode = #tpu.pipeline_mode<synchronous>, transform_indices = @transform_2, window_bounds = array<i64: 128, 256>}, {pipeline_mode = #tpu.pipeline_mode<synchronous>, transform_indices = @transform_3, window_bounds = array<i64: 1, 128>}, {pipeline_mode = #tpu.pipeline_mode<synchronous>, transform_indices = @transform_4, window_bounds = array<i64: 1, 256>}, {transform_indices = @transform_5, window_bounds = array<i64: 256, 256>}]} {
    %c0 = arith.constant 0 : index
    %c0_0 = arith.constant 0 : index
    %0 = vector.load %arg1[%c0, %c0_0] : memref<256x256xf32, #tpu.memory_space<vmem>>, vector<256x256xf32>
    %c0_1 = arith.constant 0 : index
    %c0_2 = arith.constant 0 : index
    %1 = vector.load %arg2[%c0_1, %c0_2] : memref<256x128xf32, #tpu.memory_space<vmem>>, vector<256x128xf32>
    %cst = arith.constant dense<0.000000e+00> : vector<256x128xf32>
    %2 = tpu.matmul %0, %1, %cst {dimension_numbers = #tpu.dot_dimension_numbers<[1], [0], [0], [1], [0, 0, 1, 1], [], []>} : vector<256x256xf32>, vector<256x128xf32>, vector<256x128xf32> -> vector<256x128xf32>
    %c0_3 = arith.constant 0 : index
    %c0_4 = arith.constant 0 : index
    %3 = vector.load %arg4[%c0_3, %c0_4] : memref<1x128xf32, #tpu.memory_space<vmem>>, vector<1x128xf32>
    %4 = vector.broadcast %3 : vector<1x128xf32> to vector<256x128xf32>
    %5 = arith.addf %2, %4 : vector<256x128xf32>
    %cst_5 = arith.constant 0.000000e+00 : f32
    %6 = vector.broadcast %cst_5 : f32 to vector<256x128xf32>
    %7 = arith.maximumf %5, %6 : vector<256x128xf32>
    %c0_6 = arith.constant 0 : index
    %c0_7 = arith.constant 0 : index
    %8 = vector.load %arg3[%c0_6, %c0_7] : memref<128x256xf32, #tpu.memory_space<vmem>>, vector<128x256xf32>
    %cst_8 = arith.constant dense<0.000000e+00> : vector<256x256xf32>
    %9 = tpu.matmul %7, %8, %cst_8 {dimension_numbers = #tpu.dot_dimension_numbers<[1], [0], [0], [1], [0, 0, 1, 1], [], []>} : vector<256x128xf32>, vector<128x256xf32>, vector<256x256xf32> -> vector<256x256xf32>
    %c0_9 = arith.constant 0 : index
    %c0_10 = arith.constant 0 : index
    %10 = vector.load %arg5[%c0_9, %c0_10] : memref<1x256xf32, #tpu.memory_space<vmem>>, vector<1x256xf32>
    %11 = vector.broadcast %10 : vector<1x256xf32> to vector<256x256xf32>
    %12 = arith.addf %9, %11 : vector<256x256xf32>
    %13 = math.tanh %12 : vector<256x256xf32>
    %c0_11 = arith.constant 0 : index
    %c0_12 = arith.constant 0 : index
    %14 = vector.load %arg6[%c0_11, %c0_12] : memref<256x256xf32, #tpu.memory_space<vmem>>, vector<256x256xf32>
    tpu.vector_store %arg6[%c0_11, %c0_12], %13 {strides = array<i32>} : memref<256x256xf32, #tpu.memory_space<vmem>>, vector<256x256xf32>,
    return
  }
  func.func @transform_0(%arg0: i32) -> (i32, i32) {
    %c0_i32 = arith.constant 0 : i32
    %c0_i32_0 = arith.constant 0 : i32
    return %arg0, %c0_i32 : i32, i32
  }
  func.func @transform_1(%arg0: i32) -> (i32, i32) {
    %c0_i32 = arith.constant 0 : i32
    %c0_i32_0 = arith.constant 0 : i32
    %c0_i32_1 = arith.constant 0 : i32
    return %c0_i32, %c0_i32_0 : i32, i32
  }
  func.func @transform_2(%arg0: i32) -> (i32, i32) {
    %c0_i32 = arith.constant 0 : i32
    %c0_i32_0 = arith.constant 0 : i32
    %c0_i32_1 = arith.constant 0 : i32
    return %c0_i32, %c0_i32_0 : i32, i32
  }
  func.func @transform_3(%arg0: i32) -> (i32, i32) {
    %c0_i32 = arith.constant 0 : i32
    %c0_i32_0 = arith.constant 0 : i32
    %c0_i32_1 = arith.constant 0 : i32
    return %c0_i32, %c0_i32_0 : i32, i32
  }
  func.func @transform_4(%arg0: i32) -> (i32, i32) {
    %c0_i32 = arith.constant 0 : i32
    %c0_i32_0 = arith.constant 0 : i32
    %c0_i32_1 = arith.constant 0 : i32
    return %c0_i32, %c0_i32_0 : i32, i32
  }
  func.func @transform_5(%arg0: i32) -> (i32, i32) {
    %c0_i32 = arith.constant 0 : i32
    %c0_i32_0 = arith.constant 0 : i32
    return %arg0, %c0_i32 : i32, i32
  }
}

</mosaic_0001>

<llo_original>
// kernel: _forward_jit.1
$region0: #{_forward_jit.1}
  #allocation0 [shape = 'u32[]', space=smem, size = 0x4, offset = 0x4, fixed_abs, tag = 'smem constant byte address 0x4 - core index']
  #allocation1 [shape = 'u32[144,128]{1,0:T(1,128)}', space=vmem, size = 0x12000, scoped, tag = 'internal scratch']
  %s0 = inlined_call_operand.hbm [shape: f32[256,256], index: 0, kind: input, shape index: {}]
  %s1 = inlined_call_operand.vmem [shape: f32[256,128], index: 1, kind: input, shape index: {}]
  %s2 = inlined_call_operand.vmem [shape: f32[128,256], index: 2, kind: input, shape index: {}]
  %s3 = inlined_call_operand.vmem [shape: f32[1,128], index: 3, kind: input, shape index: {}]
  %s4 = inlined_call_operand.vmem [shape: f32[1,256], index: 4, kind: input, shape index: {}]
  %s5 = inlined_call_operand.hbm [shape: f32[256,256], index: 5, kind: output, shape index: {}]
  %s6 = sld [smem:[#allocation0]]
  $region34: #{_forward_jit.1} parent=0
    _
  %s8 = ssub.s32 1, %s6
  %s9 = scalar_select 0, %s8, %s6
  $region1: #{_forward_jit.1} parent=0
    #allocation2 [shape = 'u8[262144]{0}', space=vmem, size = 0x40000, scoped, tag = 'input window, operand 0, single buffered']
    #allocation3 [shape = 's32[1]{0}', space=sflag, size = 0x4, scoped, tag = 'scoped memory for _forward_jit.1']
    #allocation4 [shape = 's32[1]{0}', space=sflag, size = 0x4, scoped, tag = 'scoped memory for _forward_jit.1']
    #allocation5 [shape = 'u8[262144]{0}', space=vmem, size = 0x40000, scoped, tag = 'output window, operand 0, single buffered']
    %10 = vsyncpa [#allocation3], 0
    %11 = vsyncpa [#allocation4], 0
    // Predicated region
    $region2: #{_forward_jit.1} parent=1 // pred_check
      _
    $region3: #{_forward_jit.1} parent=1 // pred_check_branch
      %13 = sbr.rel (0) target = $region5
    $region4: #{_forward_jit.1} parent=1 // pred_region
      %s15 = ssub.s32 8192, 8192
      %16 = vsyncadd [#allocation3], %s15
      %s17 = sshll.u32 [#allocation2], 4
      %s18 = int_to_ptr.vmem [resolvable:$true] %s17
      %23 = dma.hbm_to_vmem [thread:$0]  %s0, 8192, %s18, [#allocation3], 256, 256, 16
    $region5: #{_forward_jit.1} parent=1 // pred_fallthru
      _
    // Predicated region
    $region6: #{_forward_jit.1} parent=1 // pred_check
      _
    $region7: #{_forward_jit.1} parent=1 // pred_check_branch
      %25 = sbr.rel (0) target = $region9
    $region8: #{_forward_jit.1} parent=1 // pred_region
      _
    $region9: #{_forward_jit.1} parent=1 // pred_fallthru
      _
    // Predicated region
    $region10: #{_forward_jit.1} parent=1 // pred_check
      _
    $region11: #{_forward_jit.1} parent=1 // pred_check_branch
      %27 = sbr.rel (0) target = $region13
    $region12: #{_forward_jit.1} parent=1 // pred_region
      _
    $region13: #{_forward_jit.1} parent=1 // pred_fallthru
      _
    // Predicated region
    $region14: #{_forward_jit.1} parent=1 // pred_check
      _
    $region15: #{_forward_jit.1} parent=1 // pred_check_branch
      %29 = sbr.rel (0) target = $region17
    $region16: #{_forward_jit.1} parent=1 // pred_region
      _
    $region17: #{_forward_jit.1} parent=1 // pred_fallthru
      _
    // Predicated region
    $region18: #{_forward_jit.1} parent=1 // pred_check
      _
    $region19: #{_forward_jit.1} parent=1 // pred_check_branch
      %31 = sbr.rel (0) target = $region21
    $region20: #{_forward_jit.1} parent=1 // pred_region
      _
    $region21: #{_forward_jit.1} parent=1 // pred_fallthru
      _
    // Predicated region
    $region22: #{_forward_jit.1} parent=1 // pred_check
      _
    $region23: #{_forward_jit.1} parent=1 // pred_check_branch
      %33 = sbr.rel (0) target = $region25
    $region24: #{_forward_jit.1} parent=1 // pred_region
      %34 = dma.done [#allocation3], 8192
    $region25: #{_forward_jit.1} parent=1 // pred_fallthru
      _
    %v35 = vld [vmem:[#allocation2] sm:$0xff]
    %v36 = vld [vmem:[#allocation2 + $0x8] sm:$0xff]
    %v37 = vld [vmem:[#allocation2 + $0x10] sm:$0xff]
    %v38 = vld [vmem:[#allocation2 + $0x18] sm:$0xff]
    %v39 = vld [vmem:[#allocation2 + $0x20] sm:$0xff]
    %v40 = vld [vmem:[#allocation2 + $0x28] sm:$0xff]
    %v41 = vld [vmem:[#allocation2 + $0x30] sm:$0xff]
    %v42 = vld [vmem:[#allocation2 + $0x38] sm:$0xff]
    %v43 = vld [vmem:[#allocation2 + $0x40] sm:$0xff]
    %v44 = vld [vmem:[#allocation2 + $0x48] sm:$0xff]
    %v45 = vld [vmem:[#allocation2 + $0x50] sm:$0xff]
    %v46 = vld [vmem:[#allocation2 + $0x58] sm:$0xff]
    %v47 = vld [vmem:[#allocation2 + $0x60] sm:$0xff]
    %v48 = vld [vmem:[#allocation2 + $0x68] sm:$0xff]
    %v49 = vld [vmem:[#allocation2 + $0x70] sm:$0xff]
    %v50 = vld [vmem:[#allocation2 + $0x78] sm:$0xff]
    %v51 = vld [vmem:[#allocation2 + $0x80] sm:$0xff]
    %v52 = vld [vmem:[#allocation2 + $0x88] sm:$0xff]
    %v53 = vld [vmem:[#allocation2 + $0x90] sm:$0xff]
    %v54 = vld [vmem:[#allocation2 + $0x98] sm:$0xff]
    %v55 = vld [vmem:[#allocation2 + $0xa0] sm:$0xff]
    %v56 = vld [vmem:[#allocation2 + $0xa8] sm:$0xff]
    %v57 = vld [vmem:[#allocation2 + $0xb0] sm:$0xff]
    %v58 = vld [vmem:[#allocation2 + $0xb8] sm:$0xff]
    %v59 = vld [vmem:[#allocation2 + $0xc0] sm:$0xff]
    %v60 = vld [vmem:[#allocation2 + $0xc8] sm:$0xff]
    %v61 = vld [vmem:[#allocation2 + $0xd0] sm:$0xff]
    %v62 = vld [vmem:[#allocation2 + $0xd8] sm:$0xff]
    %v63 = vld [vmem:[#allocation2 + $0xe0] sm:$0xff]
    %v64 = vld [vmem:[#allocation2 + $0xe8] sm:$0xff]
    %v65 = vld [vmem:[#allocation2 + $0xf0] sm:$0xff]
    %v66 = vld [vmem:[#allocation2 + $0xf8] sm:$0xff]
    %v67 = vld [vmem:[#allocation2 + $0x100] sm:$0xff]
    %v68 = vld [vmem:[#allocation2 + $0x108] sm:$0xff]
    %v69 = vld [vmem:[#allocation2 + $0x110] sm:$0xff]
    %v70 = vld [vmem:[#allocation2 + $0x118] sm:$0xff]
    %v71 = vld [vmem:[#allocation2 + $0x120] sm:$0xff]
    %v72 = vld [vmem:[#allocation2 + $0x128] sm:$0xff]
    %v73 = vld [vmem:[#allocation2 + $0x130] sm:$0xff]
    %v74 = vld [vmem:[#allocation2 + $0x138] sm:$0xff]
    %v75 = vld [vmem:[#allocation2 + $0x140] sm:$0xff]
    %v76 = vld [vmem:[#allocation2 + $0x148] sm:$0xff]
    %v77 = vld [vmem:[#allocation2 + $0x150] sm:$0xff]
    %v78 = vld [vmem:[#allocation2 + $0x158] sm:$0xff]
    %v79 = vld [vmem:[#allocation2 + $0x160] sm:$0xff]
    %v80 = vld [vmem:[#allocation2 + $0x168] sm:$0xff]
    %v81 = vld [vmem:[#allocation2 + $0x170] sm:$0xff]
    %v82 = vld [vmem:[#allocation2 + $0x178] sm:$0xff]
    %v83 = vld [vmem:[#allocation2 + $0x180] sm:$0xff]
    %v84 = vld [vmem:[#allocation2 + $0x188] sm:$0xff]
    %v85 = vld [vmem:[#allocation2 + $0x190] sm:$0xff]
    %v86 = vld [vmem:[#allocation2 + $0x198] sm:$0xff]
    %v87 = vld [vmem:[#allocation2 + $0x1a0] sm:$0xff]
    %v88 = vld [vmem:[#allocation2 + $0x1a8] sm:$0xff]
    %v89 = vld [vmem:[#allocation2 + $0x1b0] sm:$0xff]
    %v90 = vld [vmem:[#allocation2 + $0x1b8] sm:$0xff]
    %v91 = vld [vmem:[#allocation2 + $0x1c0] sm:$0xff]
    %v92 = vld [vmem:[#allocation2 + $0x1c8] sm:$0xff]
    %v93 = vld [vmem:[#allocation2 + $0x1d0] sm:$0xff]
    %v94 = vld [vmem:[#allocation2 + $0x1d8] sm:$0xff]
    %v95 = vld [vmem:[#allocation2 + $0x1e0] sm:$0xff]
    %v96 = vld [vmem:[#allocation2 + $0x1e8] sm:$0xff]
    %v97 = vld [vmem:[#allocation2 + $0x1f0] sm:$0xff]
    %v98 = vld [vmem:[#allocation2 + $0x1f8] sm:$0xff]
    %v99 = vld [vmem:[%s1] sm:$0xff]
    %v100 = vld [vmem:[%s1 + $0x8] sm:$0xff]
    %v101 = vld [vmem:[%s1 + $0x10] sm:$0xff]
    %v102 = vld [vmem:[%s1 + $0x18] sm:$0xff]
    %v103 = vld [vmem:[%s1 + $0x20] sm:$0xff]
    %v104 = vld [vmem:[%s1 + $0x28] sm:$0xff]
    %v105 = vld [vmem:[%s1 + $0x30] sm:$0xff]
    %v106 = vld [vmem:[%s1 + $0x38] sm:$0xff]
    %v107 = vld [vmem:[%s1 + $0x40] sm:$0xff]
    %v108 = vld [vmem:[%s1 + $0x48] sm:$0xff]
    %v109 = vld [vmem:[%s1 + $0x50] sm:$0xff]
    %v110 = vld [vmem:[%s1 + $0x58] sm:$0xff]
    %v111 = vld [vmem:[%s1 + $0x60] sm:$0xff]
    %v112 = vld [vmem:[%s1 + $0x68] sm:$0xff]
    %v113 = vld [vmem:[%s1 + $0x70] sm:$0xff]
    %v114 = vld [vmem:[%s1 + $0x78] sm:$0xff]
    %v115 = vld [vmem:[%s1 + $0x80] sm:$0xff]
    %v116 = vld [vmem:[%s1 + $0x88] sm:$0xff]
    %v117 = vld [vmem:[%s1 + $0x90] sm:$0xff]
    %v118 = vld [vmem:[%s1 + $0x98] sm:$0xff]
    %v119 = vld [vmem:[%s1 + $0xa0] sm:$0xff]
    %v120 = vld [vmem:[%s1 + $0xa8] sm:$0xff]
    %v121 = vld [vmem:[%s1 + $0xb0] sm:$0xff]
    %v122 = vld [vmem:[%s1 + $0xb8] sm:$0xff]
    %v123 = vld [vmem:[%s1 + $0xc0] sm:$0xff]
    %v124 = vld [vmem:[%s1 + $0xc8] sm:$0xff]
    %v125 = vld [vmem:[%s1 + $0xd0] sm:$0xff]
    %v126 = vld [vmem:[%s1 + $0xd8] sm:$0xff]
    %v127 = vld [vmem:[%s1 + $0xe0] sm:$0xff]
    %v128 = vld [vmem:[%s1 + $0xe8] sm:$0xff]
    %v129 = vld [vmem:[%s1 + $0xf0] sm:$0xff]
    %v130 = vld [vmem:[%s1 + $0xf8] sm:$0xff]
    %v131 = vld [vmem:[%s3] sm:$0x1]
    %v133 = vlaneseq
    %v134 = vshrl.u32 %v133, 7
    %v135 = vsub.s32 0, %v134
    %v136 = vrot.slane %v131, %v135
    %138 = vmatprep.subr.mxu0 0.0
    %139 = vmatpush1.msra.mxu0 %v99
    %140 = vmatprep.subr.mxu0 0.0
    %141 = vmatpush1.msra.mxu0 %v100
    %142 = vmatprep.subr.mxu0 0.0
    %143 = vmatpush1.msra.mxu0 %v101
    %144 = vmatprep.subr.mxu0 0.0
    %145 = vmatpush1.msra.mxu0 %v102
    %146 = vmatprep.subr.mxu0 0.0
    %147 = vmatpush1.msra.mxu0 %v103
    %148 = vmatprep.subr.mxu0 0.0
    %149 = vmatpush1.msra.mxu0 %v104
    %150 = vmatprep.subr.mxu0 0.0
    %151 = vmatpush1.msra.mxu0 %v105
    %152 = vmatprep.subr.mxu0 0.0
    %153 = vmatpush1.msra.mxu0 %v106
    %154 = vmatprep.subr.mxu0 0.0
    %155 = vmatpush1.msra.mxu0 %v107
    %156 = vmatprep.subr.mxu0 0.0
    %157 = vmatpush1.msra.mxu0 %v108
    %158 = vmatprep.subr.mxu0 0.0
    %159 = vmatpush1.msra.mxu0 %v109
    %160 = vmatprep.subr.mxu0 0.0
    %161 = vmatpush1.msra.mxu0 %v110
    %162 = vmatprep.subr.mxu0 0.0
    %163 = vmatpush1.msra.mxu0 %v111
    %164 = vmatprep.subr.mxu0 0.0
    %165 = vmatpush1.msra.mxu0 %v112
    %166 = vmatprep.subr.mxu0 0.0
    %167 = vmatpush1.msra.mxu0 %v113
    %168 = vmatprep.subr.mxu0 0.0
    %169 = vmatpush1.msra.mxu0 %v114
    %170 = vmatprep.subr.mxu0 0.0
    %171 = vmatpush1.msra.mxu0 %v115
    %172 = vmatprep.subr.mxu0 0.0
    %173 = vmatpush1.msra.mxu0 %v116
    %174 = vmatprep.subr.mxu0 0.0
    %175 = vmatpush1.msra.mxu0 %v117
    %176 = vmatprep.subr.mxu0 0.0
    %177 = vmatpush1.msra.mxu0 %v118
    %178 = vmatprep.subr.mxu0 0.0
    %179 = vmatpush1.msra.mxu0 %v119
    %180 = vmatprep.subr.mxu0 0.0
    %181 = vmatpush1.msra.mxu0 %v120
    %182 = vmatprep.subr.mxu0 0.0
    %183 = vmatpush1.msra.mxu0 %v121
    %184 = vmatprep.subr.mxu0 0.0
    %185 = vmatpush1.msra.mxu0 %v122
    %186 = vmatprep.subr.mxu0 0.0
    %187 = vmatpush1.msra.mxu0 %v123
    %188 = vmatprep.subr.mxu0 0.0
    %189 = vmatpush1.msra.mxu0 %v124
    %190 = vmatprep.subr.mxu0 0.0
    %191 = vmatpush1.msra.mxu0 %v125
    %192 = vmatprep.subr.mxu0 0.0
    %193 = vmatpush1.msra.mxu0 %v126
    %194 = vmatprep.subr.mxu0 0.0
    %195 = vmatpush1.msra.mxu0 %v127
    %196 = vmatprep.subr.mxu0 0.0
    %197 = vmatpush1.msra.mxu0 %v128
    %198 = vmatprep.subr.mxu0 0.0
    %199 = vmatpush1.msra.mxu0 %v129
    %200 = vmatprep.subr.mxu0 0.0
    %201 = vmatpush1.msra.mxu0 %v130
    %202 = vmatprep.mubr.f32.mxu0 %v36
    %203 = vmatmul.mubr.f32.gmra.mrb[0].mxu0 %v35
    %v204 = vpop.f32.mrb[0].mxu0
    %v205 = vadd.f32 %v136, %v204
    %v206 = vpop.f32.mrb[0].mxu0
    %207 = vmatprep.mubr.f32.mxu0 %v38
    %208 = vmatmul.mubr.f32.gmra.mrb[0].mxu0 %v37
    %v209 = vpop.f32.mrb[0].mxu0
    %v210 = vadd.f32 %v136, %v209
    %v211 = vpop.f32.mrb[0].mxu0
    %212 = vmatprep.mubr.f32.mxu0 %v40
    %213 = vmatmul.mubr.f32.gmra.mrb[0].mxu0 %v39
    %v214 = vpop.f32.mrb[0].mxu0
    %v215 = vadd.f32 %v136, %v214
    %v216 = vpop.f32.mrb[0].mxu0
    %217 = vmatprep.mubr.f32.mxu0 %v42
    %218 = vmatmul.mubr.f32.gmra.mrb[0].mxu0 %v41
    %v219 = vpop.f32.mrb[0].mxu0
    %v220 = vadd.f32 %v136, %v219
    %v221 = vpop.f32.mrb[0].mxu0
    %222 = vmatprep.mubr.f32.mxu0 %v44
    %223 = vmatmul.mubr.f32.gmra.mrb[0].mxu0 %v43
    %v224 = vpop.f32.mrb[0].mxu0
    %v225 = vadd.f32 %v136, %v224
    %v226 = vpop.f32.mrb[0].mxu0
    %227 = vmatprep.mubr.f32.mxu0 %v46
    %228 = vmatmul.mubr.f32.gmra.mrb[0].mxu0 %v45
    %v229 = vpop.f32.mrb[0].mxu0
    %v230 = vadd.f32 %v136, %v229
    %v231 = vpop.f32.mrb[0].mxu0
    %232 = vmatprep.mubr.f32.mxu0 %v48
    %233 = vmatmul.mubr.f32.gmra.mrb[0].mxu0 %v47
    %v234 = vpop.f32.mrb[0].mxu0
    %v235 = vadd.f32 %v136, %v234
    %v236 = vpop.f32.mrb[0].mxu0
    %237 = vmatprep.mubr.f32.mxu0 %v50
    %238 = vmatmul.mubr.f32.gmra.mrb[0].mxu0 %v49
    %v239 = vpop.f32.mrb[0].mxu0
    %v240 = vadd.f32 %v136, %v239
    %v241 = vpop.f32.mrb[0].mxu0
    %242 = vmatprep.mubr.f32.mxu0 %v52
    %243 = vmatmul.mubr.f32.gmra.mrb[0].mxu0 %v51
    %v244 = vpop.f32.mrb[0].mxu0
    %v245 = vadd.f32 %v136, %v244
    %v246 = vpop.f32.mrb[0].mxu0
    %247 = vmatprep.mubr.f32.mxu0 %v54
    %248 = vmatmul.mubr.f32.gmra.mrb[0].mxu0 %v53
    %v249 = vpop.f32.mrb[0].mxu0
    %v250 = vadd.f32 %v136, %v249
    %v251 = vpop.f32.mrb[0].mxu0
    %252 = vmatprep.mubr.f32.mxu0 %v56
    %253 = vmatmul.mubr.f32.gmra.mrb[0].mxu0 %v55
    %v254 = vpop.f32.mrb[0].mxu0
    %v255 = vadd.f32 %v136, %v254
    %v256 = vpop.f32.mrb[0].mxu0
    %257 = vmatprep.mubr.f32.mxu0 %v58
    %258 = vmatmul.mubr.f32.gmra.mrb[0].mxu0 %v57
    %v259 = vpop.f32.mrb[0].mxu0
    %v260 = vadd.f32 %v136, %v259
    %v261 = vpop.f32.mrb[0].mxu0
    %262 = vmatprep.mubr.f32.mxu0 %v60
    %263 = vmatmul.mubr.f32.gmra.mrb[0].mxu0 %v59
    %v264 = vpop.f32.mrb[0].mxu0
    %v265 = vadd.f32 %v136, %v264
    %v266 = vpop.f32.mrb[0].mxu0
    %267 = vmatprep.mubr.f32.mxu0 %v62
    %268 = vmatmul.mubr.f32.gmra.mrb[0].mxu0 %v61
    %v269 = vpop.f32.mrb[0].mxu0
    %v270 = vadd.f32 %v136, %v269
    %v271 = vpop.f32.mrb[0].mxu0
    %272 = vmatprep.mubr.f32.mxu0 %v64
    %273 = vmatmul.mubr.f32.gmra.mrb[0].mxu0 %v63
    %v274 = vpop.f32.mrb[0].mxu0
    %v275 = vadd.f32 %v136, %v274
    %v276 = vpop.f32.mrb[0].mxu0
    %277 = vmatprep.mubr.f32.mxu0 %v66
    %278 = vmatmul.mubr.f32.gmra.mrb[0].mxu0 %v65
    %v279 = vpop.f32.mrb[0].mxu0
    %v280 = vadd.f32 %v136, %v279
    %v281 = vpop.f32.mrb[0].mxu0
    %282 = vmatprep.mubr.f32.mxu0 %v68
    %283 = vmatmul.mubr.f32.gmra.mrb[0].mxu0 %v67
    %v284 = vpop.f32.mrb[0].mxu0
    %v285 = vadd.f32 %v136, %v284
    %v286 = vpop.f32.mrb[0].mxu0
    %287 = vmatprep.mubr.f32.mxu0 %v70
    %288 = vmatmul.mubr.f32.gmra.mrb[0].mxu0 %v69
    %v289 = vpop.f32.mrb[0].mxu0
    %v290 = vadd.f32 %v136, %v289
    %v291 = vpop.f32.mrb[0].mxu0
    %292 = vmatprep.mubr.f32.mxu0 %v72
    %293 = vmatmul.mubr.f32.gmra.mrb[0].mxu0 %v71
    %v294 = vpop.f32.mrb[0].mxu0
    %v295 = vadd.f32 %v136, %v294
    %v296 = vpop.f32.mrb[0].mxu0
    %297 = vmatprep.mubr.f32.mxu0 %v74
    %298 = vmatmul.mubr.f32.gmra.mrb[0].mxu0 %v73
    %v299 = vpop.f32.mrb[0].mxu0
    %v300 = vadd.f32 %v136, %v299
    %v301 = vpop.f32.mrb[0].mxu0
    %302 = vmatprep.mubr.f32.mxu0 %v76
    %303 = vmatmul.mubr.f32.gmra.mrb[0].mxu0 %v75
    %v304 = vpop.f32.mrb[0].mxu0
    %v305 = vadd.f32 %v136, %v304
    %v306 = vpop.f32.mrb[0].mxu0
    %307 = vmatprep.mubr.f32.mxu0 %v78
    %308 = vmatmul.mubr.f32.gmra.mrb[0].mxu0 %v77
    %v309 = vpop.f32.mrb[0].mxu0
    %v310 = vadd.f32 %v136, %v309
    %v311 = vpop.f32.mrb[0].mxu0
    %312 = vmatprep.mubr.f32.mxu0 %v80
    %313 = vmatmul.mubr.f32.gmra.mrb[0].mxu0 %v79
    %v314 = vpop.f32.mrb[0].mxu0
    %v315 = vadd.f32 %v136, %v314
    %v316 = vpop.f32.mrb[0].mxu0
    %317 = vmatprep.mubr.f32.mxu0 %v82
    %318 = vmatmul.mubr.f32.gmra.mrb[0].mxu0 %v81
    %v319 = vpop.f32.mrb[0].mxu0
    %v320 = vadd.f32 %v136, %v319
    %v321 = vpop.f32.mrb[0].mxu0
    %322 = vmatprep.mubr.f32.mxu0 %v84
    %323 = vmatmul.mubr.f32.gmra.mrb[0].mxu0 %v83
    %v324 = vpop.f32.mrb[0].mxu0
    %v325 = vadd.f32 %v136, %v324
    %v326 = vpop.f32.mrb[0].mxu0
    %327 = vmatprep.mubr.f32.mxu0 %v86
    %328 = vmatmul.mubr.f32.gmra.mrb[0].mxu0 %v85
    %v329 = vpop.f32.mrb[0].mxu0
    %v330 = vadd.f32 %v136, %v329
    %v331 = vpop.f32.mrb[0].mxu0
    %332 = vmatprep.mubr.f32.mxu0 %v88
    %333 = vmatmul.mubr.f32.gmra.mrb[0].mxu0 %v87
    %v334 = vpop.f32.mrb[0].mxu0
    %v335 = vadd.f32 %v136, %v334
    %v336 = vpop.f32.mrb[0].mxu0
    %337 = vmatprep.mubr.f32.mxu0 %v90
    %338 = vmatmul.mubr.f32.gmra.mrb[0].mxu0 %v89
    %v339 = vpop.f32.mrb[0].mxu0
    %v340 = vadd.f32 %v136, %v339
    %v341 = vpop.f32.mrb[0].mxu0
    %342 = vmatprep.mubr.f32.mxu0 %v92
    %343 = vmatmul.mubr.f32.gmra.mrb[0].mxu0 %v91
    %v344 = vpop.f32.mrb[0].mxu0
    %v345 = vadd.f32 %v136, %v344
    %v346 = vpop.f32.mrb[0].mxu0
    %347 = vmatprep.mubr.f32.mxu0 %v94
    %348 = vmatmul.mubr.f32.gmra.mrb[0].mxu0 %v93
    %v349 = vpop.f32.mrb[0].mxu0
    %v350 = vadd.f32 %v136, %v349
    %v351 = vpop.f32.mrb[0].mxu0
    %352 = vmatprep.mubr.f32.mxu0 %v96
    %353 = vmatmul.mubr.f32.gmra.mrb[0].mxu0 %v95
    %v354 = vpop.f32.mrb[0].mxu0
    %v355 = vadd.f32 %v136, %v354
    %v356 = vpop.f32.mrb[0].mxu0
    %357 = vmatprep.mubr.f32.mxu0 %v98
    %358 = vmatmul.mubr.f32.gmra.mrb[0].mxu0 %v97
    %v359 = vpop.f32.mrb[0].mxu0
    %v360 = vadd.f32 %v136, %v359
    %v361 = vpop.f32.mrb[0].mxu0
    %362 = vdwg.mxu0
    %v363 = vmax.f32 %v205, 0.0
    %v364 = vmax.f32 %v210, 0.0
    %v365 = vmax.f32 %v215, 0.0
    %v366 = vmax.f32 %v220, 0.0
    %v367 = vmax.f32 %v225, 0.0
    %v368 = vmax.f32 %v230, 0.0
    %v369 = vmax.f32 %v235, 0.0
    %v370 = vmax.f32 %v240, 0.0
    %v371 = vmax.f32 %v245, 0.0
    %v372 = vmax.f32 %v250, 0.0
    %v373 = vmax.f32 %v255, 0.0
    %v374 = vmax.f32 %v260, 0.0
    %v375 = vmax.f32 %v265, 0.0
    %v376 = vmax.f32 %v270, 0.0
    %v377 = vmax.f32 %v275, 0.0
    %v378 = vmax.f32 %v280, 0.0
    %v379 = vmax.f32 %v285, 0.0
    %v380 = vmax.f32 %v290, 0.0
    %v381 = vmax.f32 %v295, 0.0
    %v382 = vmax.f32 %v300, 0.0
    %v383 = vmax.f32 %v305, 0.0
    %v384 = vmax.f32 %v310, 0.0
    %v385 = vmax.f32 %v315, 0.0
    %v386 = vmax.f32 %v320, 0.0
    %v387 = vmax.f32 %v325, 0.0
    %v388 = vmax.f32 %v330, 0.0
    %v389 = vmax.f32 %v335, 0.0
    %v390 = vmax.f32 %v340, 0.0
    %v391 = vmax.f32 %v345, 0.0
    %v392 = vmax.f32 %v350, 0.0
    %v393 = vmax.f32 %v355, 0.0
    %v394 = vmax.f32 %v360, 0.0
    %v395 = vld [vmem:[%s2] sm:$0xff]
    %v396 = vld [vmem:[%s2 + $0x8] sm:$0xff]
    %v397 = vld [vmem:[%s2 + $0x10] sm:$0xff]
    %v398 = vld [vmem:[%s2 + $0x18] sm:$0xff]
    %v399 = vld [vmem:[%s2 + $0x20] sm:$0xff]
    %v400 = vld [vmem:[%s2 + $0x28] sm:$0xff]
    %v401 = vld [vmem:[%s2 + $0x30] sm:$0xff]
    %v402 = vld [vmem:[%s2 + $0x38] sm:$0xff]
    %v403 = vld [vmem:[%s2 + $0x40] sm:$0xff]
    %v404 = vld [vmem:[%s2 + $0x48] sm:$0xff]
    %v405 = vld [vmem:[%s2 + $0x50] sm:$0xff]
    %v406 = vld [vmem:[%s2 + $0x58] sm:$0xff]
    %v407 = vld [vmem:[%s2 + $0x60] sm:$0xff]
    %v408 = vld [vmem:[%s2 + $0x68] sm:$0xff]
    %v409 = vld [vmem:[%s2 + $0x70] sm:$0xff]
    %v410 = vld [vmem:[%s2 + $0x78] sm:$0xff]
    %v411 = vld [vmem:[%s2 + $0x80] sm:$0xff]
    %v412 = vld [vmem:[%s2 + $0x88] sm:$0xff]
    %v413 = vld [vmem:[%s2 + $0x90] sm:$0xff]
    %v414 = vld [vmem:[%s2 + $0x98] sm:$0xff]
    %v415 = vld [vmem:[%s2 + $0xa0] sm:$0xff]
    %v416 = vld [vmem:[%s2 + $0xa8] sm:$0xff]
    %v417 = vld [vmem:[%s2 + $0xb0] sm:$0xff]
    %v418 = vld [vmem:[%s2 + $0xb8] sm:$0xff]
    %v419 = vld [vmem:[%s2 + $0xc0] sm:$0xff]
    %v420 = vld [vmem:[%s2 + $0xc8] sm:$0xff]
    %v421 = vld [vmem:[%s2 + $0xd0] sm:$0xff]
    %v422 = vld [vmem:[%s2 + $0xd8] sm:$0xff]
    %v423 = vld [vmem:[%s2 + $0xe0] sm:$0xff]
    %v424 = vld [vmem:[%s2 + $0xe8] sm:$0xff]
    %v425 = vld [vmem:[%s2 + $0xf0] sm:$0xff]
    %v426 = vld [vmem:[%s2 + $0xf8] sm:$0xff]
    %v427 = vld [vmem:[%s4] sm:$0x3]
    %v429 = vlaneseq
    %v430 = vshrl.u32 %v429, 7
    %v431 = vsub.s32 0, %v430
    %v432 = vrot.slane %v427, %v431
    %v433 = vlaneseq
    %v434 = vshrl.u32 %v433, 7
    %v435 = vsub.s32 1, %v434
    %v436 = vrot.slane %v427, %v435
    %439 = vmatprep.subr.mxu0 %v396
    %440 = vmatpush1.msra.mxu0 %v395
    %441 = vmatprep.subr.mxu0 %v398
    %442 = vmatpush1.msra.mxu0 %v397
    %443 = vmatprep.subr.mxu0 %v400
    %444 = vmatpush1.msra.mxu0 %v399
    %445 = vmatprep.subr.mxu0 %v402
    %446 = vmatpush1.msra.mxu0 %v401
    %447 = vmatprep.subr.mxu0 %v404
    %448 = vmatpush1.msra.mxu0 %v403
    %449 = vmatprep.subr.mxu0 %v406
    %450 = vmatpush1.msra.mxu0 %v405
    %451 = vmatprep.subr.mxu0 %v408
    %452 = vmatpush1.msra.mxu0 %v407
    %453 = vmatprep.subr.mxu0 %v410
    %454 = vmatpush1.msra.mxu0 %v409
    %455 = vmatprep.subr.mxu0 %v412
    %456 = vmatpush1.msra.mxu0 %v411
    %457 = vmatprep.subr.mxu0 %v414
    %458 = vmatpush1.msra.mxu0 %v413
    %459 = vmatprep.subr.mxu0 %v416
    %460 = vmatpush1.msra.mxu0 %v415
    %461 = vmatprep.subr.mxu0 %v418
    %462 = vmatpush1.msra.mxu0 %v417
    %463 = vmatprep.subr.mxu0 %v420
    %464 = vmatpush1.msra.mxu0 %v419
    %465 = vmatprep.subr.mxu0 %v422
    %466 = vmatpush1.msra.mxu0 %v421
    %467 = vmatprep.subr.mxu0 %v424
    %468 = vmatpush1.msra.mxu0 %v423
    %469 = vmatprep.subr.mxu0 %v426
    %470 = vmatpush1.msra.mxu0 %v425
    %471 = vmatprep.subr.mxu0 0.0
    %472 = vmatpush1.msra.mxu0 0.0
    %473 = vmatprep.subr.mxu0 0.0
    %474 = vmatpush1.msra.mxu0 0.0
    %475 = vmatprep.subr.mxu0 0.0
    %476 = vmatpush1.msra.mxu0 0.0
    %477 = vmatprep.subr.mxu0 0.0
    %478 = vmatpush1.msra.mxu0 0.0
    %479 = vmatprep.subr.mxu0 0.0
    %480 = vmatpush1.msra.mxu0 0.0
    %481 = vmatprep.subr.mxu0 0.0
    %482 = vmatpush1.msra.mxu0 0.0
    %483 = vmatprep.subr.mxu0 0.0
    %484 = vmatpush1.msra.mxu0 0.0
    %485 = vmatprep.subr.mxu0 0.0
    %486 = vmatpush1.msra.mxu0 0.0
    %487 = vmatprep.subr.mxu0 0.0
    %488 = vmatpush1.msra.mxu0 0.0
    %489 = vmatprep.subr.mxu0 0.0
    %490 = vmatpush1.msra.mxu0 0.0
    %491 = vmatprep.subr.mxu0 0.0
    %492 = vmatpush1.msra.mxu0 0.0
    %493 = vmatprep.subr.mxu0 0.0
    %494 = vmatpush1.msra.mxu0 0.0
    %495 = vmatprep.subr.mxu0 0.0
    %496 = vmatpush1.msra.mxu0 0.0
    %497 = vmatprep.subr.mxu0 0.0
    %498 = vmatpush1.msra.mxu0 0.0
    %499 = vmatprep.subr.mxu0 0.0
    %500 = vmatpush1.msra.mxu0 0.0
    %501 = vmatprep.subr.mxu0 0.0
    %502 = vmatpush1.msra.mxu0 0.0
    %503 = vmatprep.mubr.f32.mxu0 0.0
    %504 = vmatmul.mubr.f32.gmra.mrb[0].mxu0 %v363
    %v505 = vpop.f32.mrb[0].mxu0
    %v506 = vadd.f32 %v432, %v505
    %v507 = vpop.f32.mrb[0].mxu0
    %v508 = vadd.f32 %v436, %v507
    %509 = vmatprep.mubr.f32.mxu0 0.0
    %510 = vmatmul.mubr.f32.gmra.mrb[0].mxu0 %v364
    %v511 = vpop.f32.mrb[0].mxu0
    %v512 = vadd.f32 %v432, %v511
    %v513 = vpop.f32.mrb[0].mxu0
    %v514 = vadd.f32 %v436, %v513
    %515 = vmatprep.mubr.f32.mxu0 0.0
    %516 = vmatmul.mubr.f32.gmra.mrb[0].mxu0 %v365
    %v517 = vpop.f32.mrb[0].mxu0
    %v518 = vadd.f32 %v432, %v517
    %v519 = vpop.f32.mrb[0].mxu0
    %v520 = vadd.f32 %v436, %v519
    %521 = vmatprep.mubr.f32.mxu0 0.0
    %522 = vmatmul.mubr.f32.gmra.mrb[0].mxu0 %v366
    %v523 = vpop.f32.mrb[0].mxu0
    %v524 = vadd.f32 %v432, %v523
    %v525 = vpop.f32.mrb[0].mxu0
    %v526 = vadd.f32 %v436, %v525
    %527 = vmatprep.mubr.f32.mxu0 0.0
    %528 = vmatmul.mubr.f32.gmra.mrb[0].mxu0 %v367
    %v529 = vpop.f32.mrb[0].mxu0
    %v530 = vadd.f32 %v432, %v529
    %v531 = vpop.f32.mrb[0].mxu0
    %v532 = vadd.f32 %v436, %v531
    %533 = vmatprep.mubr.f32.mxu0 0.0
    %534 = vmatmul.mubr.f32.gmra.mrb[0].mxu0 %v368
    %v535 = vpop.f32.mrb[0].mxu0
    %v536 = vadd.f32 %v432, %v535
    %v537 = vpop.f32.mrb[0].mxu0
    %v538 = vadd.f32 %v436, %v537
    %539 = vmatprep.mubr.f32.mxu0 0.0
    %540 = vmatmul.mubr.f32.gmra.mrb[0].mxu0 %v369
    %v541 = vpop.f32.mrb[0].mxu0
    %v542 = vadd.f32 %v432, %v541
    %v543 = vpop.f32.mrb[0].mxu0
    %v544 = vadd.f32 %v436, %v543
    %545 = vmatprep.mubr.f32.mxu0 0.0
    %546 = vmatmul.mubr.f32.gmra.mrb[0].mxu0 %v370
    %v547 = vpop.f32.mrb[0].mxu0
    %v548 = vadd.f32 %v432, %v547
    %v549 = vpop.f32.mrb[0].mxu0
    %v550 = vadd.f32 %v436, %v549
    %551 = vmatprep.mubr.f32.mxu0 0.0
    %552 = vmatmul.mubr.f32.gmra.mrb[0].mxu0 %v371
    %v553 = vpop.f32.mrb[0].mxu0
    %v554 = vadd.f32 %v432, %v553
    %v555 = vpop.f32.mrb[0].mxu0
    %v556 = vadd.f32 %v436, %v555
    %557 = vmatprep.mubr.f32.mxu0 0.0
    %558 = vmatmul.mubr.f32.gmra.mrb[0].mxu0 %v372
    %v559 = vpop.f32.mrb[0].mxu0
    %v560 = vadd.f32 %v432, %v559
    %v561 = vpop.f32.mrb[0].mxu0
    %v562 = vadd.f32 %v436, %v561
    %563 = vmatprep.mubr.f32.mxu0 0.0
    %564 = vmatmul.mubr.f32.gmra.mrb[0].mxu0 %v373
    %v565 = vpop.f32.mrb[0].mxu0
    %v566 = vadd.f32 %v432, %v565
    %v567 = vpop.f32.mrb[0].mxu0
    %v568 = vadd.f32 %v436, %v567
    %569 = vmatprep.mubr.f32.mxu0 0.0
    %570 = vmatmul.mubr.f32.gmra.mrb[0].mxu0 %v374
    %v571 = vpop.f32.mrb[0].mxu0
    %v572 = vadd.f32 %v432, %v571
    %v573 = vpop.f32.mrb[0].mxu0
    %v574 = vadd.f32 %v436, %v573
    %575 = vmatprep.mubr.f32.mxu0 0.0
    %576 = vmatmul.mubr.f32.gmra.mrb[0].mxu0 %v375
    %v577 = vpop.f32.mrb[0].mxu0
    %v578 = vadd.f32 %v432, %v577
    %v579 = vpop.f32.mrb[0].mxu0
    %v580 = vadd.f32 %v436, %v579
    %581 = vmatprep.mubr.f32.mxu0 0.0
    %582 = vmatmul.mubr.f32.gmra.mrb[0].mxu0 %v376
    %v583 = vpop.f32.mrb[0].mxu0
    %v584 = vadd.f32 %v432, %v583
    %v585 = vpop.f32.mrb[0].mxu0
    %v586 = vadd.f32 %v436, %v585
    %587 = vmatprep.mubr.f32.mxu0 0.0
    %588 = vmatmul.mubr.f32.gmra.mrb[0].mxu0 %v377
    %v589 = vpop.f32.mrb[0].mxu0
    %v590 = vadd.f32 %v432, %v589
    %v591 = vpop.f32.mrb[0].mxu0
    %v592 = vadd.f32 %v436, %v591
    %593 = vmatprep.mubr.f32.mxu0 0.0
    %594 = vmatmul.mubr.f32.gmra.mrb[0].mxu0 %v378
    %v595 = vpop.f32.mrb[0].mxu0
    %v596 = vadd.f32 %v432, %v595
    %v597 = vpop.f32.mrb[0].mxu0
    %v598 = vadd.f32 %v436, %v597
    %599 = vmatprep.mubr.f32.mxu0 0.0
    %600 = vmatmul.mubr.f32.gmra.mrb[0].mxu0 %v379
    %v601 = vpop.f32.mrb[0].mxu0
    %v602 = vadd.f32 %v432, %v601
    %v603 = vpop.f32.mrb[0].mxu0
    %v604 = vadd.f32 %v436, %v603
    %605 = vmatprep.mubr.f32.mxu0 0.0
    %606 = vmatmul.mubr.f32.gmra.mrb[0].mxu0 %v380
    %v607 = vpop.f32.mrb[0].mxu0
    %v608 = vadd.f32 %v432, %v607
    %v609 = vpop.f32.mrb[0].mxu0
    %v610 = vadd.f32 %v436, %v609
    %611 = vmatprep.mubr.f32.mxu0 0.0
    %612 = vmatmul.mubr.f32.gmra.mrb[0].mxu0 %v381
    %v613 = vpop.f32.mrb[0].mxu0
    %v614 = vadd.f32 %v432, %v613
    %v615 = vpop.f32.mrb[0].mxu0
    %v616 = vadd.f32 %v436, %v615
    %617 = vmatprep.mubr.f32.mxu0 0.0
    %618 = vmatmul.mubr.f32.gmra.mrb[0].mxu0 %v382
    %v619 = vpop.f32.mrb[0].mxu0
    %v620 = vadd.f32 %v432, %v619
    %v621 = vpop.f32.mrb[0].mxu0
    %v622 = vadd.f32 %v436, %v621
    %623 = vmatprep.mubr.f32.mxu0 0.0
    %624 = vmatmul.mubr.f32.gmra.mrb[0].mxu0 %v383
    %v625 = vpop.f32.mrb[0].mxu0
    %v626 = vadd.f32 %v432, %v625
    %v627 = vpop.f32.mrb[0].mxu0
    %v628 = vadd.f32 %v436, %v627
    %629 = vmatprep.mubr.f32.mxu0 0.0
    %630 = vmatmul.mubr.f32.gmra.mrb[0].mxu0 %v384
    %v631 = vpop.f32.mrb[0].mxu0
    %v632 = vadd.f32 %v432, %v631
    %v633 = vpop.f32.mrb[0].mxu0
    %v634 = vadd.f32 %v436, %v633
    %635 = vmatprep.mubr.f32.mxu0 0.0
    %636 = vmatmul.mubr.f32.gmra.mrb[0].mxu0 %v385
    %v637 = vpop.f32.mrb[0].mxu0
    %v638 = vadd.f32 %v432, %v637
    %v639 = vpop.f32.mrb[0].mxu0
    %v640 = vadd.f32 %v436, %v639
    %641 = vmatprep.mubr.f32.mxu0 0.0
    %642 = vmatmul.mubr.f32.gmra.mrb[0].mxu0 %v386
    %v643 = vpop.f32.mrb[0].mxu0
    %v644 = vadd.f32 %v432, %v643
    %v645 = vpop.f32.mrb[0].mxu0
    %v646 = vadd.f32 %v436, %v645
    %647 = vmatprep.mubr.f32.mxu0 0.0
    %648 = vmatmul.mubr.f32.gmra.mrb[0].mxu0 %v387
    %v649 = vpop.f32.mrb[0].mxu0
    %v650 = vadd.f32 %v432, %v649
    %v651 = vpop.f32.mrb[0].mxu0
    %v652 = vadd.f32 %v436, %v651
    %653 = vmatprep.mubr.f32.mxu0 0.0
    %654 = vmatmul.mubr.f32.gmra.mrb[0].mxu0 %v388
    %v655 = vpop.f32.mrb[0].mxu0
    %v656 = vadd.f32 %v432, %v655
    %v657 = vpop.f32.mrb[0].mxu0
    %v658 = vadd.f32 %v436, %v657
    %659 = vmatprep.mubr.f32.mxu0 0.0
    %660 = vmatmul.mubr.f32.gmra.mrb[0].mxu0 %v389
    %v661 = vpop.f32.mrb[0].mxu0
    %v662 = vadd.f32 %v432, %v661
    %v663 = vpop.f32.mrb[0].mxu0
    %v664 = vadd.f32 %v436, %v663
    %665 = vmatprep.mubr.f32.mxu0 0.0
    %666 = vmatmul.mubr.f32.gmra.mrb[0].mxu0 %v390
    %v667 = vpop.f32.mrb[0].mxu0
    %v668 = vadd.f32 %v432, %v667
    %v669 = vpop.f32.mrb[0].mxu0
    %v670 = vadd.f32 %v436, %v669
    %671 = vmatprep.mubr.f32.mxu0 0.0
    %672 = vmatmul.mubr.f32.gmra.mrb[0].mxu0 %v391
    %v673 = vpop.f32.mrb[0].mxu0
    %v674 = vadd.f32 %v432, %v673
    %v675 = vpop.f32.mrb[0].mxu0
    %v676 = vadd.f32 %v436, %v675
    %677 = vmatprep.mubr.f32.mxu0 0.0
    %678 = vmatmul.mubr.f32.gmra.mrb[0].mxu0 %v392
    %v679 = vpop.f32.mrb[0].mxu0
    %v680 = vadd.f32 %v432, %v679
    %v681 = vpop.f32.mrb[0].mxu0
    %v682 = vadd.f32 %v436, %v681
    %683 = vmatprep.mubr.f32.mxu0 0.0
    %684 = vmatmul.mubr.f32.gmra.mrb[0].mxu0 %v393
    %v685 = vpop.f32.mrb[0].mxu0
    %v686 = vadd.f32 %v432, %v685
    %v687 = vpop.f32.mrb[0].mxu0
    %v688 = vadd.f32 %v436, %v687
    %689 = vmatprep.mubr.f32.mxu0 0.0
    %690 = vmatmul.mubr.f32.gmra.mrb[0].mxu0 %v394
    %v691 = vpop.f32.mrb[0].mxu0
    %v692 = vadd.f32 %v432, %v691
    %v693 = vpop.f32.mrb[0].mxu0
    %v694 = vadd.f32 %v436, %v693
    %695 = vdwg.mxu0
    %v696 = vtanh.pop %v506
    %v697 = vtanh.pop %v508
    %v698 = vtanh.pop %v512
    %v699 = vtanh.pop %v514
    %v700 = vtanh.pop %v518
    %v701 = vtanh.pop %v520
    %v702 = vtanh.pop %v524
    %v703 = vtanh.pop %v526
    %v704 = vtanh.pop %v530
    %v705 = vtanh.pop %v532
    %v706 = vtanh.pop %v536
    %v707 = vtanh.pop %v538
    %v708 = vtanh.pop %v542
    %v709 = vtanh.pop %v544
    %v710 = vtanh.pop %v548
    %v711 = vtanh.pop %v550
    %v712 = vtanh.pop %v554
    %v713 = vtanh.pop %v556
    %v714 = vtanh.pop %v560
    %v715 = vtanh.pop %v562
    %v716 = vtanh.pop %v566
    %v717 = vtanh.pop %v568
    %v718 = vtanh.pop %v572
    %v719 = vtanh.pop %v574
    %v720 = vtanh.pop %v578
    %v721 = vtanh.pop %v580
    %v722 = vtanh.pop %v584
    %v723 = vtanh.pop %v586
    %v724 = vtanh.pop %v590
    %v725 = vtanh.pop %v592
    %v726 = vtanh.pop %v596
    %v727 = vtanh.pop %v598
    %v728 = vtanh.pop %v602
    %v729 = vtanh.pop %v604
    %v730 = vtanh.pop %v608
    %v731 = vtanh.pop %v610
    %v732 = vtanh.pop %v614
    %v733 = vtanh.pop %v616
    %v734 = vtanh.pop %v620
    %v735 = vtanh.pop %v622
    %v736 = vtanh.pop %v626
    %v737 = vtanh.pop %v628
    %v738 = vtanh.pop %v632
    %v739 = vtanh.pop %v634
    %v740 = vtanh.pop %v638
    %v741 = vtanh.pop %v640
    %v742 = vtanh.pop %v644
    %v743 = vtanh.pop %v646
    %v744 = vtanh.pop %v650
    %v745 = vtanh.pop %v652
    %v746 = vtanh.pop %v656
    %v747 = vtanh.pop %v658
    %v748 = vtanh.pop %v662
    %v749 = vtanh.pop %v664
    %v750 = vtanh.pop %v668
    %v751 = vtanh.pop %v670
    %v752 = vtanh.pop %v674
    %v753 = vtanh.pop %v676
    %v754 = vtanh.pop %v680
    %v755 = vtanh.pop %v682
    %v756 = vtanh.pop %v686
    %v757 = vtanh.pop %v688
    %v758 = vtanh.pop %v692
    %v759 = vtanh.pop %v694
    %760 = vst [vmem:[#allocation5] sm:$0xff] %v696
    %761 = vst [vmem:[#allocation5 + $0x8] sm:$0xff] %v697
    %762 = vst [vmem:[#allocation5 + $0x10] sm:$0xff] %v698
    %763 = vst [vmem:[#allocation5 + $0x18] sm:$0xff] %v699
    %764 = vst [vmem:[#allocation5 + $0x20] sm:$0xff] %v700
    %765 = vst [vmem:[#allocation5 + $0x28] sm:$0xff] %v701
    %766 = vst [vmem:[#allocation5 + $0x30] sm:$0xff] %v702
    %767 = vst [vmem:[#allocation5 + $0x38] sm:$0xff] %v703
    %768 = vst [vmem:[#allocation5 + $0x40] sm:$0xff] %v704
    %769 = vst [vmem:[#allocation5 + $0x48] sm:$0xff] %v705
    %770 = vst [vmem:[#allocation5 + $0x50] sm:$0xff] %v706
    %771 = vst [vmem:[#allocation5 + $0x58] sm:$0xff] %v707
    %772 = vst [vmem:[#allocation5 + $0x60] sm:$0xff] %v708
    %773 = vst [vmem:[#allocation5 + $0x68] sm:$0xff] %v709
    %774 = vst [vmem:[#allocation5 + $0x70] sm:$0xff] %v710
    %775 = vst [vmem:[#allocation5 + $0x78] sm:$0xff] %v711
    %776 = vst [vmem:[#allocation5 + $0x80] sm:$0xff] %v712
    %777 = vst [vmem:[#allocation5 + $0x88] sm:$0xff] %v713
    %778 = vst [vmem:[#allocation5 + $0x90] sm:$0xff] %v714
    %779 = vst [vmem:[#allocation5 + $0x98] sm:$0xff] %v715
    %780 = vst [vmem:[#allocation5 + $0xa0] sm:$0xff] %v716
    %781 = vst [vmem:[#allocation5 + $0xa8] sm:$0xff] %v717
    %782 = vst [vmem:[#allocation5 + $0xb0] sm:$0xff] %v718
    %783 = vst [vmem:[#allocation5 + $0xb8] sm:$0xff] %v719
    %784 = vst [vmem:[#allocation5 + $0xc0] sm:$0xff] %v720
    %785 = vst [vmem:[#allocation5 + $0xc8] sm:$0xff] %v721
    %786 = vst [vmem:[#allocation5 + $0xd0] sm:$0xff] %v722
    %787 = vst [vmem:[#allocation5 + $0xd8] sm:$0xff] %v723
    %788 = vst [vmem:[#allocation5 + $0xe0] sm:$0xff] %v724
    %789 = vst [vmem:[#allocation5 + $0xe8] sm:$0xff] %v725
    %790 = vst [vmem:[#allocation5 + $0xf0] sm:$0xff] %v726
    %791 = vst [vmem:[#allocation5 + $0xf8] sm:$0xff] %v727
    %792 = vst [vmem:[#allocation5 + $0x100] sm:$0xff] %v728
    %793 = vst [vmem:[#allocation5 + $0x108] sm:$0xff] %v729
    %794 = vst [vmem:[#allocation5 + $0x110] sm:$0xff] %v730
    %795 = vst [vmem:[#allocation5 + $0x118] sm:$0xff] %v731
    %796 = vst [vmem:[#allocation5 + $0x120] sm:$0xff] %v732
    %797 = vst [vmem:[#allocation5 + $0x128] sm:$0xff] %v733
    %798 = vst [vmem:[#allocation5 + $0x130] sm:$0xff] %v734
    %799 = vst [vmem:[#allocation5 + $0x138] sm:$0xff] %v735
    %800 = vst [vmem:[#allocation5 + $0x140] sm:$0xff] %v736
    %801 = vst [vmem:[#allocation5 + $0x148] sm:$0xff] %v737
    %802 = vst [vmem:[#allocation5 + $0x150] sm:$0xff] %v738
    %803 = vst [vmem:[#allocation5 + $0x158] sm:$0xff] %v739
    %804 = vst [vmem:[#allocation5 + $0x160] sm:$0xff] %v740
    %805 = vst [vmem:[#allocation5 + $0x168] sm:$0xff] %v741
    %806 = vst [vmem:[#allocation5 + $0x170] sm:$0xff] %v742
    %807 = vst [vmem:[#allocation5 + $0x178] sm:$0xff] %v743
    %808 = vst [vmem:[#allocation5 + $0x180] sm:$0xff] %v744
    %809 = vst [vmem:[#allocation5 + $0x188] sm:$0xff] %v745
    %810 = vst [vmem:[#allocation5 + $0x190] sm:$0xff] %v746
    %811 = vst [vmem:[#allocation5 + $0x198] sm:$0xff] %v747
    %812 = vst [vmem:[#allocation5 + $0x1a0] sm:$0xff] %v748
    %813 = vst [vmem:[#allocation5 + $0x1a8] sm:$0xff] %v749
    %814 = vst [vmem:[#allocation5 + $0x1b0] sm:$0xff] %v750
    %815 = vst [vmem:[#allocation5 + $0x1b8] sm:$0xff] %v751
    %816 = vst [vmem:[#allocation5 + $0x1c0] sm:$0xff] %v752
    %817 = vst [vmem:[#allocation5 + $0x1c8] sm:$0xff] %v753
    %818 = vst [vmem:[#allocation5 + $0x1d0] sm:$0xff] %v754
    %819 = vst [vmem:[#allocation5 + $0x1d8] sm:$0xff] %v755
    %820 = vst [vmem:[#allocation5 + $0x1e0] sm:$0xff] %v756
    %821 = vst [vmem:[#allocation5 + $0x1e8] sm:$0xff] %v757
    %822 = vst [vmem:[#allocation5 + $0x1f0] sm:$0xff] %v758
    %823 = vst [vmem:[#allocation5 + $0x1f8] sm:$0xff] %v759
    // Predicated region
    $region26: #{_forward_jit.1} parent=1 // pred_check
      _
    $region27: #{_forward_jit.1} parent=1 // pred_check_branch
      %825 = sbr.rel (0) target = $region29
    $region28: #{_forward_jit.1} parent=1 // pred_region
      %s827 = ssub.s32 8192, 8192
      %828 = vsyncadd [#allocation4], %s827
      %s829 = sshll.u32 [#allocation5], 4
      %s830 = int_to_ptr.vmem [resolvable:$true] %s829
      %835 = dma.vmem_to_hbm [thread:$0]  %s830, 8192, %s5, [#allocation4], 256, 256, 16
    $region29: #{_forward_jit.1} parent=1 // pred_fallthru
      _
    // Predicated region
    $region30: #{_forward_jit.1} parent=1 // pred_check
      _
    $region31: #{_forward_jit.1} parent=1 // pred_check_branch
      %837 = sbr.rel (0) target = $region33
    $region32: #{_forward_jit.1} parent=1 // pred_region
      %838 = dma.done [#allocation4], 8192
    $region33: #{_forward_jit.1} parent=1 // pred_fallthru
      _
    %839 = vsyncpa [#allocation3], 1
    %840 = vsyncpa [#allocation4], 1

</llo_original>
